<compile_context>
chip_gen: v5e
topology: v5e:2x2
jax: 0.10.0
libtpu: 0.0.40
codegen_flags: <defaults>
</compile_context>

<pallas_src>
import jax
import jax.numpy as jnp
from jax.experimental import pallas as pl
from jax.experimental.pallas import tpu as pltpu


def _round_up(v, m):
    return ((v + m - 1) // m) * m


def _patch_embed_kernel(x_ref, w_ref, b_ref, o_ref):
    # x_ref: (TM, K) patch rows (compute dtype, streamed per grid step)
    # w_ref: (K, E)  projection weight (compute dtype, resident, single-buffered)
    # b_ref: (1, E)  bias (f32, resident, single-buffered)
    # o_ref: (TM, E) output tile
    acc = jnp.dot(x_ref[...], w_ref[...], preferred_element_type=jnp.float32)
    o_ref[...] = (acc + b_ref[...]).astype(o_ref.dtype)


def patch_embedding(x, weight, bias, patch_size, *,
                    compute_dtype=jnp.bfloat16, out_dtype=None, tile_m=1024):
    """Pallas ViT patch embedding: Conv2d(k=p, stride=p) -> flatten(2).transpose(1,2).

    x: (B, C, H, W); weight: (E, C, p, p); bias: (E,).  Returns (B, N, E).
    compute_dtype: MXU input dtype (default bf16; accumulation stays f32).
    out_dtype: output dtype (default x.dtype; pass bf16 to halve writeback).
    """
    B, C, H, W = x.shape
    E = weight.shape[0]
    p = patch_size
    Hp, Wp = H // p, W // p
    N = Hp * Wp
    K = C * p * p
    M = B * N

    cdt = jnp.dtype(compute_dtype) if compute_dtype is not None else jnp.dtype(x.dtype)
    odt = jnp.dtype(out_dtype) if out_dtype is not None else jnp.dtype(x.dtype)

    # --- glue: one fused cast+transpose -> (M, K) patch rows, feature order
    # (c, ph, pw) matching the flattened Conv2d weight.  No pad, no extra pass.
    xp = jnp.transpose(x.astype(cdt).reshape(B, C, Hp, p, Wp, p),
                       (0, 2, 4, 1, 3, 5)).reshape(M, K)
    w2 = weight.astype(cdt).reshape(E, K).T                 # (K, E), tiny copy
    b2 = bias.astype(jnp.float32).reshape(1, E)             # f32 epilogue

    # --- row-tile sizing ---
    sub = 8 * max(1, 4 // cdt.itemsize)          # 8 rows f32, 16 rows bf16
    # Keep >= 2 grid steps whenever M allows (v7x: feed both TensorCores).
    tm_two = _round_up(pl.cdiv(M, 2), sub)
    TM = max(sub, min(_round_up(int(tile_m), sub), tm_two))
    # VMEM budget: weight + bias + double-buffered x / out tiles.  Sized for
    # v7x's 64 MiB physical VMEM (v5e/v6e have 128 MiB, so also safe there).
    budget = 40 * 1024 * 1024
    w_bytes = K * E * cdt.itemsize + E * 4
    per_row = 2 * (K * cdt.itemsize + E * odt.itemsize)      # 2 = double buffer
    if w_bytes + TM * per_row > budget:
        TM = max(sub, ((budget - w_bytes) // per_row // sub) * sub)
    grid_m = pl.cdiv(M, TM)                      # ragged last tile is masked

    vmem_need = 2 * w_bytes + TM * per_row       # worst case (double-buf weight)
    vmem_limit = int(min(max(vmem_need + (4 << 20), 32 << 20), 100 << 20))

    cost = pl.CostEstimate(
        flops=2 * M * K * E,
        transcendentals=0,
        bytes_accessed=M * K * cdt.itemsize + K * E * cdt.itemsize
        + E * 4 + M * E * odt.itemsize,
    )

    def _call(single_buffer_resident):
        if single_buffer_resident:
            # Constant index_map -> never re-DMA'd; single buffer halves VMEM.
            w_spec = pl.BlockSpec((K, E), lambda i: (0, 0),
                                  pipeline_mode=pl.Buffered(1))
            b_spec = pl.BlockSpec((1, E), lambda i: (0, 0),
                                  pipeline_mode=pl.Buffered(1))
        else:
            w_spec = pl.BlockSpec((K, E), lambda i: (0, 0))
            b_spec = pl.BlockSpec((1, E), lambda i: (0, 0))
        return pl.pallas_call(
            _patch_embed_kernel,
            out_shape=jax.ShapeDtypeStruct((M, E), odt),
            grid_spec=pl.GridSpec(
                grid=(grid_m,),
                in_specs=[
                    pl.BlockSpec((TM, K), lambda i: (i, 0)),   # patch rows: streamed
                    w_spec,                                    # weight: resident
                    b_spec,                                    # bias: resident
                ],
                out_specs=pl.BlockSpec((TM, E), lambda i: (i, 0)),
            ),
            compiler_params=pltpu.CompilerParams(
                dimension_semantics=("parallel",),             # v7x: shard M over TCs
                vmem_limit_bytes=vmem_limit),
            cost_estimate=cost,
        )(xp, w2, b2)

    try:
        out = _call(True)
    except Exception:
        # pl.Buffered(1) not supported by this jax build: keep default buffering.
        out = _call(False)

    return out.reshape(B, N, E)                  # contiguous split: free


if __name__ == "__main__":
    # Small ViT-ish config: img 16x16, patch 4, in_chans 4, embed_dim 32.
    B, C, H, W = 2, 4, 16, 16
    p = 4
    E = 32

    key = jax.random.PRNGKey(0)
    kx, kw, kb = jax.random.split(key, 3)
    x = jax.random.normal(kx, (B, C, H, W), dtype=jnp.float32)
    weight = jax.random.normal(kw, (E, C, p, p), dtype=jnp.float32) * 0.02
    bias = jax.random.normal(kb, (E,), dtype=jnp.float32) * 0.02

    # reference: XLA conv with the same semantics as nn.Conv2d(stride=p)
    ref = jax.lax.conv_general_dilated(
        x, weight, window_strides=(p, p), padding="VALID",
        dimension_numbers=("NCHW", "OIHW", "NCHW"))
    ref = ref + bias.reshape(1, E, 1, 1)
    ref = ref.reshape(B, E, -1).transpose(0, 2, 1)          # (B, N, E)

    # default path: bf16 compute, f32 accumulation / output
    out = jax.block_until_ready(patch_embedding(x, weight, bias, p))
    assert out.shape == (B, (H // p) * (W // p), E), out.shape
    assert jnp.allclose(out, ref, atol=2e-2, rtol=2e-2)

    # f32 compute path: tight check
    out_f32 = jax.block_until_ready(
        patch_embedding(x, weight, bias, p, compute_dtype=jnp.float32))
    assert out_f32.shape == (B, (H // p) * (W // p), E), out_f32.shape
    assert jnp.allclose(out_f32, ref, atol=1e-5, rtol=1e-5)

    print("KERNEL_OK")
</pallas_src>

<mosaic_0001>
module attributes {stable_mosaic.version = 11 : i64} {
  func.func @_patch_embed_kernel(%arg0: i32, %arg1: memref<16x64xbf16, #tpu.memory_space<vmem>>, %arg2: memref<64x32xbf16, #tpu.memory_space<vmem>>, %arg3: memref<1x32xf32, #tpu.memory_space<vmem>>, %arg4: memref<16x32xf32, #tpu.memory_space<vmem>>) attributes {dimension_semantics = [#tpu.dimension_semantics<parallel>], iteration_bounds = array<i64: 2>, scalar_prefetch = 0 : i64, scratch_operands = 0 : i64, tpu.core_type = #tpu.core_type<tc>, window_params = [{transform_indices = @transform_0, window_bounds = array<i64: 16, 64>}, {pipeline_mode = #tpu.pipeline_mode<synchronous>, transform_indices = @transform_1, window_bounds = array<i64: 64, 32>}, {pipeline_mode = #tpu.pipeline_mode<synchronous>, transform_indices = @transform_2, window_bounds = array<i64: 1, 32>}, {transform_indices = @transform_3, window_bounds = array<i64: 16, 32>}]} {
    %c0 = arith.constant 0 : index
    %c0_0 = arith.constant 0 : index
    %0 = vector.load %arg1[%c0, %c0_0] : memref<16x64xbf16, #tpu.memory_space<vmem>>, vector<16x64xbf16>
    %c0_1 = arith.constant 0 : index
    %c0_2 = arith.constant 0 : index
    %1 = vector.load %arg2[%c0_1, %c0_2] : memref<64x32xbf16, #tpu.memory_space<vmem>>, vector<64x32xbf16>
    %cst = arith.constant dense<0.000000e+00> : vector<16x32xf32>
    %2 = tpu.matmul %0, %1, %cst {dimension_numbers = #tpu.dot_dimension_numbers<[1], [0], [0], [1], [0, 0, 1, 1], [], []>} : vector<16x64xbf16>, vector<64x32xbf16>, vector<16x32xf32> -> vector<16x32xf32>
    %c0_3 = arith.constant 0 : index
    %c0_4 = arith.constant 0 : index
    %3 = vector.load %arg3[%c0_3, %c0_4] : memref<1x32xf32, #tpu.memory_space<vmem>>, vector<1x32xf32>
    %4 = vector.broadcast %3 : vector<1x32xf32> to vector<16x32xf32>
    %5 = arith.addf %2, %4 : vector<16x32xf32>
    %c0_5 = arith.constant 0 : index
    %c0_6 = arith.constant 0 : index
    %6 = vector.load %arg4[%c0_5, %c0_6] : memref<16x32xf32, #tpu.memory_space<vmem>>, vector<16x32xf32>
    tpu.vector_store %arg4[%c0_5, %c0_6], %5 {strides = array<i32>} : memref<16x32xf32, #tpu.memory_space<vmem>>, vector<16x32xf32>,
    return
  }
  func.func @transform_0(%arg0: i32) -> (i32, i32) {
    %c0_i32 = arith.constant 0 : i32
    %c0_i32_0 = arith.constant 0 : i32
    return %arg0, %c0_i32 : i32, i32
  }
  func.func @transform_1(%arg0: i32) -> (i32, i32) {
    %c0_i32 = arith.constant 0 : i32
    %c0_i32_0 = arith.constant 0 : i32
    %c0_i32_1 = arith.constant 0 : i32
    return %c0_i32, %c0_i32_0 : i32, i32
  }
  func.func @transform_2(%arg0: i32) -> (i32, i32) {
    %c0_i32 = arith.constant 0 : i32
    %c0_i32_0 = arith.constant 0 : i32
    %c0_i32_1 = arith.constant 0 : i32
    return %c0_i32, %c0_i32_0 : i32, i32
  }
  func.func @transform_3(%arg0: i32) -> (i32, i32) {
    %c0_i32 = arith.constant 0 : i32
    %c0_i32_0 = arith.constant 0 : i32
    return %arg0, %c0_i32 : i32, i32
  }
}

module attributes {stable_mosaic.version = 11 : i64} {
  func.func @_patch_embed_kernel(%arg0: i32, %arg1: memref<16x64xbf16, #tpu.memory_space<vmem>>, %arg2: memref<64x32xbf16, #tpu.memory_space<vmem>>, %arg3: memref<1x32xf32, #tpu.memory_space<vmem>>, %arg4: memref<16x32xf32, #tpu.memory_space<vmem>>) attributes {dimension_semantics = [#tpu.dimension_semantics<parallel>], iteration_bounds = array<i64: 2>, scalar_prefetch = 0 : i64, scratch_operands = 0 : i64, tpu.core_type = #tpu.core_type<tc>, window_params = [{transform_indices = @transform_0, window_bounds = array<i64: 16, 64>}, {pipeline_mode = #tpu.pipeline_mode<synchronous>, transform_indices = @transform_1, window_bounds = array<i64: 64, 32>}, {pipeline_mode = #tpu.pipeline_mode<synchronous>, transform_indices = @transform_2, window_bounds = array<i64: 1, 32>}, {transform_indices = @transform_3, window_bounds = array<i64: 16, 32>}]} {
    %c0 = arith.constant 0 : index
    %c0_0 = arith.constant 0 : index
    %0 = vector.load %arg1[%c0, %c0_0] : memref<16x64xbf16, #tpu.memory_space<vmem>>, vector<16x64xbf16>
    %c0_1 = arith.constant 0 : index
    %c0_2 = arith.constant 0 : index
    %1 = vector.load %arg2[%c0_1, %c0_2] : memref<64x32xbf16, #tpu.memory_space<vmem>>, vector<64x32xbf16>
    %cst = arith.constant dense<0.000000e+00> : vector<16x32xf32>
    %2 = tpu.matmul %0, %1, %cst {dimension_numbers = #tpu.dot_dimension_numbers<[1], [0], [0], [1], [0, 0, 1, 1], [], []>} : vector<16x64xbf16>, vector<64x32xbf16>, vector<16x32xf32> -> vector<16x32xf32>
    %c0_3 = arith.constant 0 : index
    %c0_4 = arith.constant 0 : index
    %3 = vector.load %arg3[%c0_3, %c0_4] : memref<1x32xf32, #tpu.memory_space<vmem>>, vector<1x32xf32>
    %4 = vector.broadcast %3 : vector<1x32xf32> to vector<16x32xf32>
    %5 = arith.addf %2, %4 : vector<16x32xf32>
    %c0_5 = arith.constant 0 : index
    %c0_6 = arith.constant 0 : index
    %6 = vector.load %arg4[%c0_5, %c0_6] : memref<16x32xf32, #tpu.memory_space<vmem>>, vector<16x32xf32>
    tpu.vector_store %arg4[%c0_5, %c0_6], %5 {strides = array<i32>} : memref<16x32xf32, #tpu.memory_space<vmem>>, vector<16x32xf32>,
    return
  }
  func.func @transform_0(%arg0: i32) -> (i32, i32) {
    %c0_i32 = arith.constant 0 : i32
    %c0_i32_0 = arith.constant 0 : i32
    return %arg0, %c0_i32 : i32, i32
  }
  func.func @transform_1(%arg0: i32) -> (i32, i32) {
    %c0_i32 = arith.constant 0 : i32
    %c0_i32_0 = arith.constant 0 : i32
    %c0_i32_1 = arith.constant 0 : i32
    return %c0_i32, %c0_i32_0 : i32, i32
  }
  func.func @transform_2(%arg0: i32) -> (i32, i32) {
    %c0_i32 = arith.constant 0 : i32
    %c0_i32_0 = arith.constant 0 : i32
    %c0_i32_1 = arith.constant 0 : i32
    return %c0_i32, %c0_i32_0 : i32, i32
  }
  func.func @transform_3(%arg0: i32) -> (i32, i32) {
    %c0_i32 = arith.constant 0 : i32
    %c0_i32_0 = arith.constant 0 : i32
    return %arg0, %c0_i32 : i32, i32
  }
}

</mosaic_0001>

<llo_original>
// kernel: tpu_custom_call.1
$region0: #{tpu_custom_call.1}
  #allocation0 [shape = 'u32[]', space=smem, size = 0x4, offset = 0x4, fixed_abs, tag = 'smem constant byte address 0x4 - core index']
  #allocation1 [shape = 'u32[72,128]{1,0:T(1,128)}', space=vmem, size = 0x9000, scoped, tag = 'internal scratch']
  %s0 = inlined_call_operand.vmem [shape: bf16[32,64], index: 0, kind: input, shape index: {}]
  %s1 = inlined_call_operand.vmem [shape: bf16[64,32], index: 1, kind: input, shape index: {}]
  %s2 = inlined_call_operand.vmem [shape: f32[1,32], index: 2, kind: input, shape index: {}]
  %s3 = inlined_call_operand.hbm [shape: f32[32,32], index: 3, kind: output, shape index: {}]
  %s4 = sld [smem:[#allocation0]]
  $region45: #{tpu_custom_call.1} parent=0
    _
  %s6 = ssub.s32 1, %s4
  %s7 = scalar_select 0, %s6, %s4
  $region1: #{tpu_custom_call.1} parent=0
    #allocation2 [shape = 'u8[16384]{0}', space=vmem, size = 0x4000, scoped, tag = 'output window, operand 0']
    #allocation3 [shape = 's32[2]{0}', space=sflag, size = 0x8, scoped, tag = 'scoped memory for tpu_custom_call.1']
    %8 = vsyncpa [#allocation3], 0
    %s9 = scalar_lea.sflag [#allocation3], 1
    %10 = vsyncpa %s9, 0
    loop: start=0, step=1, limit=4
    $region2: #{tpu_custom_call.1} parent=1 // loop_pre_header
      _
    $region3: #{tpu_custom_call.1} parent=1 // loop_header
      %s12 = sphi 0, %s16
      %p13 = scmp.ge.s32.totalorder %s12, 4
      %s22 = sphi 0, %s24
      %s25 = sphi 0, %s22
      %s26 = sphi 0, %s25
      %s42 = sphi 0, %s26
      %s46 = sphi 0, %s46
      %s48 = sphi 0, %s46
      %s49 = sphi 0, %s48
      %s63 = sphi 0, %s49
      %s67 = sphi 0, %s67
      %s69 = sphi 0, %s67
      %s70 = sphi 0, %s69
      %s84 = sphi 0, %s70
      %s90 = sphi 0, %s92
      %s93 = sphi 0, %s90
      %s94 = sphi 0, %s93
      %s110 = sphi 0, %s94
    $region4: #{tpu_custom_call.1} parent=1 // loop_header_branch
      %15 = sbr.rel (%p13) target = $region8
    $region5: #{tpu_custom_call.1} parent=1 // loop_body
      %s17 = ssub.s32 %s12, 1
      %s18 = ssub.s32 %s12, 2
      %s19 = sadd.s32 %s12, 1
      %s20 = ssub.s32 %s12, %s19
      %p21 = scmp.eq.s32.totalorder %s20, 0
      %s23 = sadd.s32 %s22, 1
      %s24 = scalar_select %p21, %s22, %s23
      %p27 = pneg %p21
      %p28 = scmp.eq.s32.totalorder %s12, 1
      %p29 = por %p27, %p28
      %p30 = scmp.ne.s32.totalorder %s22, %s25
      %p31 = scmp.eq.s32.totalorder %s12, 0
      %p32 = por %p30, %p31
      %p33 = scmp.ne.s32.totalorder %s22, %s25
      %p34 = scmp.eq.s32.totalorder %s17, 1
      %p35 = por %p33, %p34
      %p36 = scmp.ne.s32.totalorder %s25, %s26
      %p37 = scmp.eq.s32.totalorder %s17, 0
      %p38 = por %p36, %p37
      %p39 = scmp.ne.s32.totalorder %s25, %s26
      %p40 = scmp.eq.s32.totalorder %s18, 1
      %p41 = por %p39, %p40
      %p43 = scmp.ne.s32.totalorder %s26, %s42
      %p44 = scmp.eq.s32.totalorder %s18, 0
      %p45 = por %p43, %p44
      %s47 = sadd.s32 %s46, 1
      %p50 = scmp.eq.s32.totalorder %s12, 1
      %p51 = scmp.ne.s32.totalorder %s46, %s48
      %p52 = scmp.eq.s32.totalorder %s12, 0
      %p53 = por %p51, %p52
      %p54 = scmp.ne.s32.totalorder %s46, %s48
      %p55 = scmp.eq.s32.totalorder %s17, 1
      %p56 = por %p54, %p55
      %p57 = scmp.ne.s32.totalorder %s48, %s49
      %p58 = scmp.eq.s32.totalorder %s17, 0
      %p59 = por %p57, %p58
      %p60 = scmp.ne.s32.totalorder %s48, %s49
      %p61 = scmp.eq.s32.totalorder %s18, 1
      %p62 = por %p60, %p61
      %p64 = scmp.ne.s32.totalorder %s49, %s63
      %p65 = scmp.eq.s32.totalorder %s18, 0
      %p66 = por %p64, %p65
      %s68 = sadd.s32 %s67, 1
      %p71 = scmp.eq.s32.totalorder %s12, 1
      %p72 = scmp.ne.s32.totalorder %s67, %s69
      %p73 = scmp.eq.s32.totalorder %s12, 0
      %p74 = por %p72, %p73
      %p75 = scmp.ne.s32.totalorder %s67, %s69
      %p76 = scmp.eq.s32.totalorder %s17, 1
      %p77 = por %p75, %p76
      %p78 = scmp.ne.s32.totalorder %s69, %s70
      %p79 = scmp.eq.s32.totalorder %s17, 0
      %p80 = por %p78, %p79
      %p81 = scmp.ne.s32.totalorder %s69, %s70
      %p82 = scmp.eq.s32.totalorder %s18, 1
      %p83 = por %p81, %p82
      %p85 = scmp.ne.s32.totalorder %s70, %s84
      %p86 = scmp.eq.s32.totalorder %s18, 0
      %p87 = por %p85, %p86
      %s88 = ssub.s32 %s12, %s19
      %p89 = scmp.eq.s32.totalorder %s88, 0
      %s91 = sadd.s32 %s90, 1
      %s92 = scalar_select %p89, %s90, %s91
      %p95 = pneg %p89
      %p96 = scmp.eq.s32.totalorder %s12, 1
      %p97 = por %p95, %p96
      %p98 = scmp.ne.s32.totalorder %s90, %s93
      %p99 = scmp.eq.s32.totalorder %s12, 0
      %p100 = por %p98, %p99
      %p101 = scmp.ne.s32.totalorder %s90, %s93
      %p102 = scmp.eq.s32.totalorder %s17, 1
      %p103 = por %p101, %p102
      %p104 = scmp.ne.s32.totalorder %s93, %s94
      %p105 = scmp.eq.s32.totalorder %s17, 0
      %p106 = por %p104, %p105
      %p107 = scmp.ne.s32.totalorder %s93, %s94
      %p108 = scmp.eq.s32.totalorder %s18, 1
      %p109 = por %p107, %p108
      %p111 = scmp.ne.s32.totalorder %s94, %s110
      %p112 = scmp.eq.s32.totalorder %s18, 0
      %p113 = por %p111, %p112
      %p114 = scmp.le.s32.totalorder 1, %s12
      %p115 = scmp.lt.s32.totalorder %s12, 3
      %p116 = pnand %p114, %p115
      %p117 = pneg %p116
      // Predicated region
      $region9: #{tpu_custom_call.1} parent=5 // pred_check
        _
      $region10: #{tpu_custom_call.1} parent=5 // pred_check_branch
        %119 = sbr.rel (%p116) target = $region12
      $region11: #{tpu_custom_call.1} parent=5 // pred_region
        %s120 = ssub.s32 %s12, 1
        // Predicated region
        $region13: #{tpu_custom_call.1} parent=11 // pred_check
          %p121 = pneg %p59
        $region14: #{tpu_custom_call.1} parent=11 // pred_check_branch
          %123 = sbr.rel (%p121) target = $region16
        $region15: #{tpu_custom_call.1} parent=11 // pred_region
          _
        $region16: #{tpu_custom_call.1} parent=11 // pred_fallthru
          _
        // Predicated region
        $region17: #{tpu_custom_call.1} parent=11 // pred_check
          %p124 = pneg %p80
        $region18: #{tpu_custom_call.1} parent=11 // pred_check_branch
          %126 = sbr.rel (%p124) target = $region20
        $region19: #{tpu_custom_call.1} parent=11 // pred_region
          _
        $region20: #{tpu_custom_call.1} parent=11 // pred_fallthru
          _
      $region12: #{tpu_custom_call.1} parent=5 // pred_fallthru
        _
      %p127 = scmp.lt.s32.totalorder %s12, 2
      // Predicated region
      $region21: #{tpu_custom_call.1} parent=5 // pred_check
        %p128 = pneg %p127
      $region22: #{tpu_custom_call.1} parent=5 // pred_check_branch
        %130 = sbr.rel (%p128) target = $region24
      $region23: #{tpu_custom_call.1} parent=5 // pred_region
        // Predicated region
        $region25: #{tpu_custom_call.1} parent=23 // pred_check
          %p131 = pneg %p32
        $region26: #{tpu_custom_call.1} parent=23 // pred_check_branch
          %133 = sbr.rel (%p131) target = $region28
        $region27: #{tpu_custom_call.1} parent=23 // pred_region
          %s134 = smul.u32 2, %s12
          %p135 = scmp.lt.s32.totalorder %s134, 3
          %s136 = scalar_select %p135, %s134, 3
          %s137 = smul.addr %s136, 4
          %s138 = scalar_lea.vmem %s0, %s137
          %s139 = smul.u32 2, %s12
        $region28: #{tpu_custom_call.1} parent=23 // pred_fallthru
          _
      $region24: #{tpu_custom_call.1} parent=5 // pred_fallthru
        _
      %p140 = scmp.le.s32.totalorder 1, %s12
      %p141 = scmp.lt.s32.totalorder %s12, 3
      %p142 = pnand %p140, %p141
      %p143 = pneg %p142
      // Predicated region
      $region29: #{tpu_custom_call.1} parent=5 // pred_check
        _
      $region30: #{tpu_custom_call.1} parent=5 // pred_check_branch
        %145 = sbr.rel (%p142) target = $region32
      $region31: #{tpu_custom_call.1} parent=5 // pred_region
        %s146 = ssub.s32 %s12, 1
        %s147 = smul.u32 2, %s17
        %p148 = scmp.lt.s32.totalorder %s147, 3
        %s149 = scalar_select %p148, %s147, 3
        %s150 = smul.addr %s149, 4
        %s151 = scalar_lea.vmem %s0, %s150
        %p152 = pneg %p38
        %p153 = pneg %p35
        %p154 = pneg %p59
        %p155 = pneg %p56
        %p156 = pneg %p80
        %p157 = pneg %p77
        %p158 = pneg %p106
        %p159 = pneg %p103
        %s160 = sand.u32 %s93, 1
        %s161 = scalar_lea.sflag [#allocation3], %s160
        %s162 = sand.u32 %s93, 1
        %s163 = smul.addr %s162, 16
        %s164 = scalar_lea.vmem [#allocation2], %s163
        %s165 = smul.u32 2, %s17
        %p166 = scmp.lt.s32.totalorder %s165, 3
        %s167 = scalar_select %p166, %s165, 3
        %s168 = smul.addr %s167, 4
        %s169 = scalar_lea.vmem %s0, %s168
        %s170 = smul.u32 2, %s17
        %s171 = smul.u32 2, %s17
        %v173 = vld [vmem:[%s169] sm:$0xf]
        %v174 = vld [vmem:[%s169 + $0x4] sm:$0xf]
        %v175 = vld [vmem:[%s1] sm:$0xf]
        %v176 = vld [vmem:[%s1 + $0x4] sm:$0xf]
        %v177 = vld [vmem:[%s1 + $0x8] sm:$0xf]
        %v178 = vld [vmem:[%s1 + $0xc] sm:$0xf]
        %v179 = vld [vmem:[%s1 + $0x10] sm:$0xf]
        %v180 = vld [vmem:[%s1 + $0x14] sm:$0xf]
        %v181 = vld [vmem:[%s1 + $0x18] sm:$0xf]
        %v182 = vld [vmem:[%s1 + $0x1c] sm:$0xf]
        %v183 = vld [vmem:[%s2] sm:$0x1]
        %v185 = vperm.slane %v183, 0
        %v189 = vunpack.c.l.b16 %v173
        %v190 = vunpack.c.l.b16 %v174
        %v191 = vpack.c.b16 %v190, %v189
        %v200 = vunpack.c.l.b16 %v175
        %v201 = vunpack.c.l.b16 %v176
        %v202 = vunpack.c.l.b16 %v177
        %v203 = vunpack.c.l.b16 %v178
        %v204 = vunpack.c.l.b16 %v179
        %v205 = vunpack.c.l.b16 %v180
        %v206 = vunpack.c.l.b16 %v181
        %v207 = vunpack.c.l.b16 %v182
        %v208 = vpack.c.b16 %v201, %v200
        %v209 = vpack.c.b16 %v203, %v202
        %v210 = vpack.c.b16 %v205, %v204
        %v211 = vpack.c.b16 %v207, %v206
        %vm216 = vcmask 523264
        %v218 = vsel %vm216, %v191, 0
        %220 = vmatpush.bf16.msra.mxu0 0
        %221 = vmatpush.bf16.msra.mxu0 0
        %222 = vmatpush.bf16.msra.mxu0 0
        %223 = vmatpush.bf16.msra.mxu0 0
        %224 = vmatpush.bf16.msra.mxu0 %v211
        %225 = vmatpush.bf16.msra.mxu0 %v210
        %226 = vmatpush.bf16.msra.mxu0 %v209
        %227 = vmatpush.bf16.msra.mxu0 %v208
        %228 = vmatmul.bf16.gmra.mxu0 %v218
        %v229 = vpop.f32.mrf.mxu0
        %v230 = vadd.f32 %v185, %v229
        %v231 = vpop.f32.mrf.mxu0
        %v232 = vadd.f32 %v185, %v231
        %233 = vdwg.mxu0
        %vm234 = vcmask 261120
        %235 = vst.msk [vmem:[%s164] sm:$0xff] %vm234, %v230
        %236 = vst.msk [vmem:[%s164 + $0x8] sm:$0xff] %vm234, %v232
        %s237 = sand.u32 %s93, 1
        %s238 = scalar_lea.sflag [#allocation3], %s237
        %s239 = sand.u32 %s93, 1
        %s240 = smul.addr %s239, 16
        %s241 = scalar_lea.vmem [#allocation2], %s240
        // Predicated region
        $region33: #{tpu_custom_call.1} parent=31 // pred_check
          %p242 = pneg %p103
        $region34: #{tpu_custom_call.1} parent=31 // pred_check_branch
          %244 = sbr.rel (%p242) target = $region36
        $region35: #{tpu_custom_call.1} parent=31 // pred_region
          %s245 = smul.u32 2, %s17
          %247 = vsyncadd %s238, 0
          %s248 = smul.addr %s245, 8
          %s249 = scalar_lea.hbm %s3, %s248
          %s250 = sshll.u32 %s241, 4
          %s251 = int_to_ptr.vmem [resolvable:$true] %s250
          %s252 = sshll.u32 %s249, 4
          %s253 = int_to_ptr.hbm [resolvable:$true] %s252
          %258 = dma.vmem_to_hbm [thread:$0]  %s251, 256, %s253, %s238, 128, 128, 8
        $region36: #{tpu_custom_call.1} parent=31 // pred_fallthru
          _
      $region32: #{tpu_custom_call.1} parent=5 // pred_fallthru
        _
      %p259 = scmp.le.s32.totalorder 2, %s12
      // Predicated region
      $region37: #{tpu_custom_call.1} parent=5 // pred_check
        %p260 = pneg %p259
      $region38: #{tpu_custom_call.1} parent=5 // pred_check_branch
        %262 = sbr.rel (%p260) target = $region40
      $region39: #{tpu_custom_call.1} parent=5 // pred_region
        %s263 = ssub.s32 %s12, 2
        // Predicated region
        $region41: #{tpu_custom_call.1} parent=39 // pred_check
          %p264 = pneg %p109
        $region42: #{tpu_custom_call.1} parent=39 // pred_check_branch
          %266 = sbr.rel (%p264) target = $region44
        $region43: #{tpu_custom_call.1} parent=39 // pred_region
          %s267 = sand.u32 %s94, 1
          %s268 = scalar_lea.sflag [#allocation3], %s267
          %s269 = sand.u32 %s94, 1
          %s270 = smul.addr %s269, 16
          %s271 = scalar_lea.vmem [#allocation2], %s270
          %273 = dma.done %s268, 256
        $region44: #{tpu_custom_call.1} parent=39 // pred_fallthru
          _
      $region40: #{tpu_custom_call.1} parent=5 // pred_fallthru
        _
    $region6: #{tpu_custom_call.1} parent=1 // loop_footer
      %s16 = sadd.s32 1, %s12
    $region7: #{tpu_custom_call.1} parent=1 // loop_footer_branch
      %11 = sbr.rel target = $region3
    $region8: #{tpu_custom_call.1} parent=1 // loop_exit
      _
    %274 = vsyncpa [#allocation3], 1
    %s275 = scalar_lea.sflag [#allocation3], 1
    %276 = vsyncpa %s275, 1

// kernel: tpu_custom_call.1
$region0: #{tpu_custom_call.1}
  #allocation0 [shape = 'u32[]', space=smem, size = 0x4, offset = 0x4, fixed_abs, tag = 'smem constant byte address 0x4 - core index']
  #allocation1 [shape = 'u32[72,128]{1,0:T(1,128)}', space=vmem, size = 0x9000, scoped, tag = 'internal scratch']
  %s0 = inlined_call_operand.vmem [shape: bf16[32,64], index: 0, kind: input, shape index: {}]
  %s1 = inlined_call_operand.vmem [shape: bf16[64,32], index: 1, kind: input, shape index: {}]
  %s2 = inlined_call_operand.vmem [shape: f32[1,32], index: 2, kind: input, shape index: {}]
  %s3 = inlined_call_operand.hbm [shape: f32[32,32], index: 3, kind: output, shape index: {}]
  %s4 = sld [smem:[#allocation0]]
  $region45: #{tpu_custom_call.1} parent=0
    _
  %s6 = ssub.s32 1, %s4
  %s7 = scalar_select 0, %s6, %s4
  $region1: #{tpu_custom_call.1} parent=0
    #allocation2 [shape = 'u8[16384]{0}', space=vmem, size = 0x4000, scoped, tag = 'output window, operand 0']
    #allocation3 [shape = 's32[2]{0}', space=sflag, size = 0x8, scoped, tag = 'scoped memory for tpu_custom_call.1']
    %8 = vsyncpa [#allocation3], 0
    %s9 = scalar_lea.sflag [#allocation3], 1
    %10 = vsyncpa %s9, 0
    loop: start=0, step=1, limit=4
    $region2: #{tpu_custom_call.1} parent=1 // loop_pre_header
      _
    $region3: #{tpu_custom_call.1} parent=1 // loop_header
      %s12 = sphi 0, %s16
      %p13 = scmp.ge.s32.totalorder %s12, 4
      %s22 = sphi 0, %s24
      %s25 = sphi 0, %s22
      %s26 = sphi 0, %s25
      %s42 = sphi 0, %s26
      %s46 = sphi 0, %s46
      %s48 = sphi 0, %s46
      %s49 = sphi 0, %s48
      %s63 = sphi 0, %s49
      %s67 = sphi 0, %s67
      %s69 = sphi 0, %s67
      %s70 = sphi 0, %s69
      %s84 = sphi 0, %s70
      %s90 = sphi 0, %s92
      %s93 = sphi 0, %s90
      %s94 = sphi 0, %s93
      %s110 = sphi 0, %s94
    $region4: #{tpu_custom_call.1} parent=1 // loop_header_branch
      %15 = sbr.rel (%p13) target = $region8
    $region5: #{tpu_custom_call.1} parent=1 // loop_body
      %s17 = ssub.s32 %s12, 1
      %s18 = ssub.s32 %s12, 2
      %s19 = sadd.s32 %s12, 1
      %s20 = ssub.s32 %s12, %s19
      %p21 = scmp.eq.s32.totalorder %s20, 0
      %s23 = sadd.s32 %s22, 1
      %s24 = scalar_select %p21, %s22, %s23
      %p27 = pneg %p21
      %p28 = scmp.eq.s32.totalorder %s12, 1
      %p29 = por %p27, %p28
      %p30 = scmp.ne.s32.totalorder %s22, %s25
      %p31 = scmp.eq.s32.totalorder %s12, 0
      %p32 = por %p30, %p31
      %p33 = scmp.ne.s32.totalorder %s22, %s25
      %p34 = scmp.eq.s32.totalorder %s17, 1
      %p35 = por %p33, %p34
      %p36 = scmp.ne.s32.totalorder %s25, %s26
      %p37 = scmp.eq.s32.totalorder %s17, 0
      %p38 = por %p36, %p37
      %p39 = scmp.ne.s32.totalorder %s25, %s26
      %p40 = scmp.eq.s32.totalorder %s18, 1
      %p41 = por %p39, %p40
      %p43 = scmp.ne.s32.totalorder %s26, %s42
      %p44 = scmp.eq.s32.totalorder %s18, 0
      %p45 = por %p43, %p44
      %s47 = sadd.s32 %s46, 1
      %p50 = scmp.eq.s32.totalorder %s12, 1
      %p51 = scmp.ne.s32.totalorder %s46, %s48
      %p52 = scmp.eq.s32.totalorder %s12, 0
      %p53 = por %p51, %p52
      %p54 = scmp.ne.s32.totalorder %s46, %s48
      %p55 = scmp.eq.s32.totalorder %s17, 1
      %p56 = por %p54, %p55
      %p57 = scmp.ne.s32.totalorder %s48, %s49
      %p58 = scmp.eq.s32.totalorder %s17, 0
      %p59 = por %p57, %p58
      %p60 = scmp.ne.s32.totalorder %s48, %s49
      %p61 = scmp.eq.s32.totalorder %s18, 1
      %p62 = por %p60, %p61
      %p64 = scmp.ne.s32.totalorder %s49, %s63
      %p65 = scmp.eq.s32.totalorder %s18, 0
      %p66 = por %p64, %p65
      %s68 = sadd.s32 %s67, 1
      %p71 = scmp.eq.s32.totalorder %s12, 1
      %p72 = scmp.ne.s32.totalorder %s67, %s69
      %p73 = scmp.eq.s32.totalorder %s12, 0
      %p74 = por %p72, %p73
      %p75 = scmp.ne.s32.totalorder %s67, %s69
      %p76 = scmp.eq.s32.totalorder %s17, 1
      %p77 = por %p75, %p76
      %p78 = scmp.ne.s32.totalorder %s69, %s70
      %p79 = scmp.eq.s32.totalorder %s17, 0
      %p80 = por %p78, %p79
      %p81 = scmp.ne.s32.totalorder %s69, %s70
      %p82 = scmp.eq.s32.totalorder %s18, 1
      %p83 = por %p81, %p82
      %p85 = scmp.ne.s32.totalorder %s70, %s84
      %p86 = scmp.eq.s32.totalorder %s18, 0
      %p87 = por %p85, %p86
      %s88 = ssub.s32 %s12, %s19
      %p89 = scmp.eq.s32.totalorder %s88, 0
      %s91 = sadd.s32 %s90, 1
      %s92 = scalar_select %p89, %s90, %s91
      %p95 = pneg %p89
      %p96 = scmp.eq.s32.totalorder %s12, 1
      %p97 = por %p95, %p96
      %p98 = scmp.ne.s32.totalorder %s90, %s93
      %p99 = scmp.eq.s32.totalorder %s12, 0
      %p100 = por %p98, %p99
      %p101 = scmp.ne.s32.totalorder %s90, %s93
      %p102 = scmp.eq.s32.totalorder %s17, 1
      %p103 = por %p101, %p102
      %p104 = scmp.ne.s32.totalorder %s93, %s94
      %p105 = scmp.eq.s32.totalorder %s17, 0
      %p106 = por %p104, %p105
      %p107 = scmp.ne.s32.totalorder %s93, %s94
      %p108 = scmp.eq.s32.totalorder %s18, 1
      %p109 = por %p107, %p108
      %p111 = scmp.ne.s32.totalorder %s94, %s110
      %p112 = scmp.eq.s32.totalorder %s18, 0
      %p113 = por %p111, %p112
      %p114 = scmp.le.s32.totalorder 1, %s12
      %p115 = scmp.lt.s32.totalorder %s12, 3
      %p116 = pnand %p114, %p115
      %p117 = pneg %p116
      // Predicated region
      $region9: #{tpu_custom_call.1} parent=5 // pred_check
        _
      $region10: #{tpu_custom_call.1} parent=5 // pred_check_branch
        %119 = sbr.rel (%p116) target = $region12
      $region11: #{tpu_custom_call.1} parent=5 // pred_region
        %s120 = ssub.s32 %s12, 1
        // Predicated region
        $region13: #{tpu_custom_call.1} parent=11 // pred_check
          %p121 = pneg %p59
        $region14: #{tpu_custom_call.1} parent=11 // pred_check_branch
          %123 = sbr.rel (%p121) target = $region16
        $region15: #{tpu_custom_call.1} parent=11 // pred_region
          _
        $region16: #{tpu_custom_call.1} parent=11 // pred_fallthru
          _
        // Predicated region
        $region17: #{tpu_custom_call.1} parent=11 // pred_check
          %p124 = pneg %p80
        $region18: #{tpu_custom_call.1} parent=11 // pred_check_branch
          %126 = sbr.rel (%p124) target = $region20
        $region19: #{tpu_custom_call.1} parent=11 // pred_region
          _
        $region20: #{tpu_custom_call.1} parent=11 // pred_fallthru
          _
      $region12: #{tpu_custom_call.1} parent=5 // pred_fallthru
        _
      %p127 = scmp.lt.s32.totalorder %s12, 2
      // Predicated region
      $region21: #{tpu_custom_call.1} parent=5 // pred_check
        %p128 = pneg %p127
      $region22: #{tpu_custom_call.1} parent=5 // pred_check_branch
        %130 = sbr.rel (%p128) target = $region24
      $region23: #{tpu_custom_call.1} parent=5 // pred_region
        // Predicated region
        $region25: #{tpu_custom_call.1} parent=23 // pred_check
          %p131 = pneg %p32
        $region26: #{tpu_custom_call.1} parent=23 // pred_check_branch
          %133 = sbr.rel (%p131) target = $region28
        $region27: #{tpu_custom_call.1} parent=23 // pred_region
          %s134 = smul.u32 2, %s12
          %p135 = scmp.lt.s32.totalorder %s134, 3
          %s136 = scalar_select %p135, %s134, 3
          %s137 = smul.addr %s136, 4
          %s138 = scalar_lea.vmem %s0, %s137
          %s139 = smul.u32 2, %s12
        $region28: #{tpu_custom_call.1} parent=23 // pred_fallthru
          _
      $region24: #{tpu_custom_call.1} parent=5 // pred_fallthru
        _
      %p140 = scmp.le.s32.totalorder 1, %s12
      %p141 = scmp.lt.s32.totalorder %s12, 3
      %p142 = pnand %p140, %p141
      %p143 = pneg %p142
      // Predicated region
      $region29: #{tpu_custom_call.1} parent=5 // pred_check
        _
      $region30: #{tpu_custom_call.1} parent=5 // pred_check_branch
        %145 = sbr.rel (%p142) target = $region32
      $region31: #{tpu_custom_call.1} parent=5 // pred_region
        %s146 = ssub.s32 %s12, 1
        %s147 = smul.u32 2, %s17
        %p148 = scmp.lt.s32.totalorder %s147, 3
        %s149 = scalar_select %p148, %s147, 3
        %s150 = smul.addr %s149, 4
        %s151 = scalar_lea.vmem %s0, %s150
        %p152 = pneg %p38
        %p153 = pneg %p35
        %p154 = pneg %p59
        %p155 = pneg %p56
        %p156 = pneg %p80
        %p157 = pneg %p77
        %p158 = pneg %p106
        %p159 = pneg %p103
        %s160 = sand.u32 %s93, 1
        %s161 = scalar_lea.sflag [#allocation3], %s160
        %s162 = sand.u32 %s93, 1
        %s163 = smul.addr %s162, 16
        %s164 = scalar_lea.vmem [#allocation2], %s163
        %s165 = smul.u32 2, %s17
        %p166 = scmp.lt.s32.totalorder %s165, 3
        %s167 = scalar_select %p166, %s165, 3
        %s168 = smul.addr %s167, 4
        %s169 = scalar_lea.vmem %s0, %s168
        %s170 = smul.u32 2, %s17
        %s171 = smul.u32 2, %s17
        %v173 = vld [vmem:[%s169] sm:$0xf]
        %v174 = vld [vmem:[%s169 + $0x4] sm:$0xf]
        %v175 = vld [vmem:[%s1] sm:$0xf]
        %v176 = vld [vmem:[%s1 + $0x4] sm:$0xf]
        %v177 = vld [vmem:[%s1 + $0x8] sm:$0xf]
        %v178 = vld [vmem:[%s1 + $0xc] sm:$0xf]
        %v179 = vld [vmem:[%s1 + $0x10] sm:$0xf]
        %v180 = vld [vmem:[%s1 + $0x14] sm:$0xf]
        %v181 = vld [vmem:[%s1 + $0x18] sm:$0xf]
        %v182 = vld [vmem:[%s1 + $0x1c] sm:$0xf]
        %v183 = vld [vmem:[%s2] sm:$0x1]
        %v185 = vperm.slane %v183, 0
        %v189 = vunpack.c.l.b16 %v173
        %v190 = vunpack.c.l.b16 %v174
        %v191 = vpack.c.b16 %v190, %v189
        %v200 = vunpack.c.l.b16 %v175
        %v201 = vunpack.c.l.b16 %v176
        %v202 = vunpack.c.l.b16 %v177
        %v203 = vunpack.c.l.b16 %v178
        %v204 = vunpack.c.l.b16 %v179
        %v205 = vunpack.c.l.b16 %v180
        %v206 = vunpack.c.l.b16 %v181
        %v207 = vunpack.c.l.b16 %v182
        %v208 = vpack.c.b16 %v201, %v200
        %v209 = vpack.c.b16 %v203, %v202
        %v210 = vpack.c.b16 %v205, %v204
        %v211 = vpack.c.b16 %v207, %v206
        %vm216 = vcmask 523264
        %v218 = vsel %vm216, %v191, 0
        %220 = vmatpush.bf16.msra.mxu0 0
        %221 = vmatpush.bf16.msra.mxu0 0
        %222 = vmatpush.bf16.msra.mxu0 0
        %223 = vmatpush.bf16.msra.mxu0 0
        %224 = vmatpush.bf16.msra.mxu0 %v211
        %225 = vmatpush.bf16.msra.mxu0 %v210
        %226 = vmatpush.bf16.msra.mxu0 %v209
        %227 = vmatpush.bf16.msra.mxu0 %v208
        %228 = vmatmul.bf16.gmra.mxu0 %v218
        %v229 = vpop.f32.mrf.mxu0
        %v230 = vadd.f32 %v185, %v229
        %v231 = vpop.f32.mrf.mxu0
        %v232 = vadd.f32 %v185, %v231
        %233 = vdwg.mxu0
        %vm234 = vcmask 261120
        %235 = vst.msk [vmem:[%s164] sm:$0xff] %vm234, %v230
        %236 = vst.msk [vmem:[%s164 + $0x8] sm:$0xff] %vm234, %v232
        %s237 = sand.u32 %s93, 1
        %s238 = scalar_lea.sflag [#allocation3], %s237
        %s239 = sand.u32 %s93, 1
        %s240 = smul.addr %s239, 16
        %s241 = scalar_lea.vmem [#allocation2], %s240
        // Predicated region
        $region33: #{tpu_custom_call.1} parent=31 // pred_check
          %p242 = pneg %p103
        $region34: #{tpu_custom_call.1} parent=31 // pred_check_branch
          %244 = sbr.rel (%p242) target = $region36
        $region35: #{tpu_custom_call.1} parent=31 // pred_region
          %s245 = smul.u32 2, %s17
          %247 = vsyncadd %s238, 0
          %s248 = smul.addr %s245, 8
          %s249 = scalar_lea.hbm %s3, %s248
          %s250 = sshll.u32 %s241, 4
          %s251 = int_to_ptr.vmem [resolvable:$true] %s250
          %s252 = sshll.u32 %s249, 4
          %s253 = int_to_ptr.hbm [resolvable:$true] %s252
          %258 = dma.vmem_to_hbm [thread:$0]  %s251, 256, %s253, %s238, 128, 128, 8
        $region36: #{tpu_custom_call.1} parent=31 // pred_fallthru
          _
      $region32: #{tpu_custom_call.1} parent=5 // pred_fallthru
        _
      %p259 = scmp.le.s32.totalorder 2, %s12
      // Predicated region
      $region37: #{tpu_custom_call.1} parent=5 // pred_check
        %p260 = pneg %p259
      $region38: #{tpu_custom_call.1} parent=5 // pred_check_branch
        %262 = sbr.rel (%p260) target = $region40
      $region39: #{tpu_custom_call.1} parent=5 // pred_region
        %s263 = ssub.s32 %s12, 2
        // Predicated region
        $region41: #{tpu_custom_call.1} parent=39 // pred_check
          %p264 = pneg %p109
        $region42: #{tpu_custom_call.1} parent=39 // pred_check_branch
          %266 = sbr.rel (%p264) target = $region44
        $region43: #{tpu_custom_call.1} parent=39 // pred_region
          %s267 = sand.u32 %s94, 1
          %s268 = scalar_lea.sflag [#allocation3], %s267
          %s269 = sand.u32 %s94, 1
          %s270 = smul.addr %s269, 16
          %s271 = scalar_lea.vmem [#allocation2], %s270
          %273 = dma.done %s268, 256
        $region44: #{tpu_custom_call.1} parent=39 // pred_fallthru
          _
      $region40: #{tpu_custom_call.1} parent=5 // pred_fallthru
        _
    $region6: #{tpu_custom_call.1} parent=1 // loop_footer
      %s16 = sadd.s32 1, %s12
    $region7: #{tpu_custom_call.1} parent=1 // loop_footer_branch
      %11 = sbr.rel target = $region3
    $region8: #{tpu_custom_call.1} parent=1 // loop_exit
      _
    %274 = vsyncpa [#allocation3], 1
    %s275 = scalar_lea.sflag [#allocation3], 1
    %276 = vsyncpa %s275, 1

</llo_original>
